<compile_context>
chip_gen: v6e
topology: v6e:2x2x1
jax: 0.10.0
libtpu: 0.0.40
codegen_flags: <defaults>
</compile_context>

<pallas_src>
import jax
import jax.numpy as jnp
from jax.experimental import pallas as pl
from jax.experimental.pallas import tpu as pltpu

# Config consistent with Net(num_rows=3, num_cols=3, player=1)
NUM_ROWS = 3
NUM_COLS = 3
NUM_SQUARES = NUM_ROWS * NUM_COLS
NUM_EDGES = NUM_ROWS * (NUM_COLS + 1) + NUM_COLS * (NUM_ROWS + 1)   # 24
INPUT_DIM = NUM_EDGES + NUM_SQUARES // 2                             # 28
HIDDEN_DIM = INPUT_DIM                                               # 28
OUTPUT_DIM = NUM_EDGES                                               # 24
HIDDEN_LAYERS = 3
NUM_LINEAR = HIDDEN_LAYERS + 2                                       # 5

PAD = 128            # lane-aligned packed feature dimension
GROUP = 32           # lanes per packed game state (28 used)
NUM_PACK = PAD // GROUP          # 4 states per 128-lane row
MAX_BLOCK_ROWS = 1024            # packed rows per grid step (cap)
MIN_SPLIT_ROWS = 128             # only split into 2 steps above 2x this


def _mlp_kernel(x_ref, w_ref, b_ref, o_ref):
    # x_ref: (BLOCK, PAD) f32          4 packed states per row
    # w_ref: (NUM_LINEAR, PAD, PAD) bf16   block-diagonal padded weights (in, out)
    # b_ref: (NUM_LINEAR, 1, PAD) f32      replicated padded biases
    # o_ref: (BLOCK, PAD) f32
    z = x_ref[...]
    for i in range(NUM_LINEAR):                      # static, fully unrolled
        w = w_ref[i]                                 # (PAD, PAD) bf16, VMEM-resident
        b = b_ref[i]                                 # (1, PAD) f32 -> broadcasts
        # bf16 only at the MXU boundary; f32 accumulation + f32 elementwise
        # (v5e-safe; also fine on v6e/v7x).
        z = jnp.dot(z.astype(jnp.bfloat16), w,
                    preferred_element_type=jnp.float32) + b
        z = jnp.maximum(z, 0.0)                      # ReLU after every Linear
    # Final gating: (1 - x) * z, re-reading x from VMEM so it is not kept
    # live across the 5 matmul stages.  Pad lanes of z are exactly 0.
    o_ref[...] = (1.0 - x_ref[...]) * z


def pad_params(weights, biases):
    """One-time (model-init) padding + 4-way block-diagonal replication.

    weights[i]: (in_i, out_i) input-major; biases[i]: (out_i,).
    """
    w_pad = jnp.zeros((NUM_LINEAR, PAD, PAD), jnp.float32)
    b_pad = jnp.zeros((NUM_LINEAR, 1, PAD), jnp.float32)
    for i, (w, b) in enumerate(zip(weights, biases)):
        for g in range(NUM_PACK):
            r0 = g * GROUP
            w_pad = w_pad.at[i, r0:r0 + w.shape[0], r0:r0 + w.shape[1]].set(w)
            b_pad = b_pad.at[i, 0, r0:r0 + b.shape[0]].set(b)
    return w_pad.astype(jnp.bfloat16), b_pad


def _tiling(num_rows: int):
    """Pick (block_rows, padded_rows) for the packed-row batch axis."""
    target = min(MAX_BLOCK_ROWS, max(8, num_rows))
    # Keep >= 2 grid steps when there's enough work for both v7x TensorCores.
    if num_rows >= 2 * MIN_SPLIT_ROWS:
        target = min(target, pl.cdiv(num_rows, 2))
    block = pl.cdiv(target, 8) * 8                   # sublane-aligned
    padded = pl.cdiv(num_rows, block) * block
    return block, padded


@jax.jit
def net_forward_batched(x, w_pad, b_pad):
    """x: (B, INPUT_DIM) f32 -> (B, NUM_EDGES) f32."""
    B = x.shape[0]
    rows = pl.cdiv(B, NUM_PACK)                      # packed rows (4 states/row)
    block, rows_pad = _tiling(rows)
    b_pack = rows_pad * NUM_PACK

    # Pack 4 states per 128-lane row: each state gets a 32-lane group
    # (28 used).  This is 4x less wrapper-side traffic than padding each
    # state to 128 lanes.
    x_pack = jnp.zeros((b_pack, GROUP), jnp.float32).at[:B, :INPUT_DIM].set(x)
    x_pack = x_pack.reshape(rows_pad, PAD)

    grid = (rows_pad // block,)
    flops = 2 * rows_pad * PAD * PAD * NUM_LINEAR
    bytes_accessed = (NUM_LINEAR * PAD * PAD * 2          # bf16 weights
                      + NUM_LINEAR * PAD * 4              # f32 biases
                      + 2 * rows_pad * PAD * 4)           # activations in + out

    out = pl.pallas_call(
        _mlp_kernel,
        out_shape=jax.ShapeDtypeStruct((rows_pad, PAD), jnp.float32),
        grid=grid,
        in_specs=[
            # activations stream block-by-block over the batch grid
            pl.BlockSpec((block, PAD), lambda i: (i, 0)),
            # weights/biases: constant index_map -> fetched once, VMEM-resident
            pl.BlockSpec((NUM_LINEAR, PAD, PAD), lambda i: (0, 0, 0)),
            pl.BlockSpec((NUM_LINEAR, 1, PAD), lambda i: (0, 0, 0)),
        ],
        out_specs=pl.BlockSpec((block, PAD), lambda i: (i, 0)),
        compiler_params=pltpu.CompilerParams(
            dimension_semantics=("parallel",)),          # dual-TC split on v7x
        cost_estimate=pl.CostEstimate(
            flops=flops, transcendentals=0, bytes_accessed=bytes_accessed),
    )(x_pack, w_pad, b_pad)

    # Unpack: each 32-lane group is one state; first NUM_EDGES lanes are real.
    out = out.reshape(b_pack, GROUP)[:B, :OUTPUT_DIM]
    return out


def net_forward(x, w_pad, b_pad):
    """Single-state forward: x (INPUT_DIM,) -> (NUM_EDGES,)."""
    return net_forward_batched(x[None, :], w_pad, b_pad)[0]


if __name__ == "__main__":
    key = jax.random.PRNGKey(0)

    # Deterministic PyTorch-Linear-style init: U(-1/sqrt(fan_in), 1/sqrt(fan_in))
    dims = [INPUT_DIM] + [HIDDEN_DIM] * (HIDDEN_LAYERS + 1) + [OUTPUT_DIM]
    weights, biases = [], []
    for i in range(NUM_LINEAR):
        key, kw, kb = jax.random.split(key, 3)
        bound = 1.0 / (dims[i] ** 0.5)
        # stored input-major (in, out): y = x @ W + b  (== torch x @ weight.T + b)
        weights.append(
            jax.random.uniform(kw, (dims[i], dims[i + 1]), jnp.float32, -bound, bound)
        )
        biases.append(
            jax.random.uniform(kb, (dims[i + 1],), jnp.float32, -bound, bound)
        )

    # One-time padding / block-diagonal replication (model init).
    w_pad, b_pad = pad_params(weights, biases)

    # Synthetic batch of game states: binary edge occupancy + square-ownership half.
    B = 256
    key, kx = jax.random.split(key)
    x_batch = (jax.random.uniform(kx, (B, INPUT_DIM), jnp.float32) > 0.5).astype(
        jnp.float32
    )

    out = jax.block_until_ready(net_forward_batched(x_batch, w_pad, b_pad))

    # Pure-JAX f32 reference (kernel uses bf16 matmuls -> loosened tolerance).
    z = x_batch
    for w, b in zip(weights, biases):
        z = jnp.maximum(z @ w + b, 0.0)
    ref = (1.0 - x_batch[:, :NUM_EDGES]) * z

    assert out.shape == (B, NUM_EDGES)
    assert jnp.allclose(out, ref, atol=3e-2, rtol=3e-2), float(
        jnp.abs(out - ref).max()
    )

    # Single-state path (matches the PyTorch forward signature) also works.
    out1 = jax.block_until_ready(net_forward(x_batch[0], w_pad, b_pad))
    assert out1.shape == (NUM_EDGES,)
    assert jnp.allclose(out1, ref[0], atol=3e-2, rtol=3e-2)

    # TODO(synk): board_to_input / game_player / save / load are host-side
    # game + I/O utilities, not part of the forward pass, so not translated.
    print("KERNEL_OK")
</pallas_src>

<mosaic_0001>
module attributes {stable_mosaic.version = 11 : i64} {
  func.func @_mlp_kernel(%arg0: i32, %arg1: memref<64x128xf32, #tpu.memory_space<vmem>>, %arg2: memref<5x128x128xbf16, #tpu.memory_space<vmem>>, %arg3: memref<5x1x128xf32, #tpu.memory_space<vmem>>, %arg4: memref<64x128xf32, #tpu.memory_space<vmem>>) attributes {dimension_semantics = [#tpu.dimension_semantics<parallel>], iteration_bounds = array<i64: 1>, scalar_prefetch = 0 : i64, scratch_operands = 0 : i64, tpu.core_type = #tpu.core_type<tc>, window_params = [{transform_indices = @transform_0, window_bounds = array<i64: 64, 128>}, {pipeline_mode = #tpu.pipeline_mode<synchronous>, transform_indices = @transform_1, window_bounds = array<i64: 5, 128, 128>}, {pipeline_mode = #tpu.pipeline_mode<synchronous>, transform_indices = @transform_2, window_bounds = array<i64: 5, 1, 128>}, {transform_indices = @transform_3, window_bounds = array<i64: 64, 128>}]} {
    %c0 = arith.constant 0 : index
    %c0_0 = arith.constant 0 : index
    %0 = vector.load %arg1[%c0, %c0_0] : memref<64x128xf32, #tpu.memory_space<vmem>>, vector<64x128xf32>
    %c0_1 = arith.constant 0 : index
    %c0_2 = arith.constant 0 : index
    %c0_3 = arith.constant 0 : index
    %1 = vector.load %arg2[%c0_1, %c0_2, %c0_3] : memref<5x128x128xbf16, #tpu.memory_space<vmem>>, vector<1x128x128xbf16>
    %2 = vector.shape_cast %1 : vector<1x128x128xbf16> to vector<128x128xbf16>
    %c0_4 = arith.constant 0 : index
    %c0_5 = arith.constant 0 : index
    %c0_6 = arith.constant 0 : index
    %3 = vector.load %arg3[%c0_4, %c0_5, %c0_6] : memref<5x1x128xf32, #tpu.memory_space<vmem>>, vector<1x1x128xf32>
    %4 = vector.shape_cast %3 : vector<1x1x128xf32> to vector<1x128xf32>
    %5 = arith.truncf %0 : vector<64x128xf32> to vector<64x128xbf16>
    %cst = arith.constant dense<0.000000e+00> : vector<64x128xf32>
    %6 = tpu.matmul %5, %2, %cst {dimension_numbers = #tpu.dot_dimension_numbers<[1], [0], [0], [1], [0, 0, 1, 1], [], []>} : vector<64x128xbf16>, vector<128x128xbf16>, vector<64x128xf32> -> vector<64x128xf32>
    %7 = vector.broadcast %4 : vector<1x128xf32> to vector<64x128xf32>
    %8 = arith.addf %6, %7 : vector<64x128xf32>
    %cst_7 = arith.constant 0.000000e+00 : f32
    %9 = vector.broadcast %cst_7 : f32 to vector<64x128xf32>
    %10 = arith.maximumf %8, %9 : vector<64x128xf32>
    %c1 = arith.constant 1 : index
    %c0_8 = arith.constant 0 : index
    %c0_9 = arith.constant 0 : index
    %11 = vector.load %arg2[%c1, %c0_8, %c0_9] : memref<5x128x128xbf16, #tpu.memory_space<vmem>>, vector<1x128x128xbf16>
    %12 = vector.shape_cast %11 : vector<1x128x128xbf16> to vector<128x128xbf16>
    %c1_10 = arith.constant 1 : index
    %c0_11 = arith.constant 0 : index
    %c0_12 = arith.constant 0 : index
    %13 = vector.load %arg3[%c1_10, %c0_11, %c0_12] : memref<5x1x128xf32, #tpu.memory_space<vmem>>, vector<1x1x128xf32>
    %14 = vector.shape_cast %13 : vector<1x1x128xf32> to vector<1x128xf32>
    %15 = arith.truncf %10 : vector<64x128xf32> to vector<64x128xbf16>
    %cst_13 = arith.constant dense<0.000000e+00> : vector<64x128xf32>
    %16 = tpu.matmul %15, %12, %cst_13 {dimension_numbers = #tpu.dot_dimension_numbers<[1], [0], [0], [1], [0, 0, 1, 1], [], []>} : vector<64x128xbf16>, vector<128x128xbf16>, vector<64x128xf32> -> vector<64x128xf32>
    %17 = vector.broadcast %14 : vector<1x128xf32> to vector<64x128xf32>
    %18 = arith.addf %16, %17 : vector<64x128xf32>
    %cst_14 = arith.constant 0.000000e+00 : f32
    %19 = vector.broadcast %cst_14 : f32 to vector<64x128xf32>
    %20 = arith.maximumf %18, %19 : vector<64x128xf32>
    %c2 = arith.constant 2 : index
    %c0_15 = arith.constant 0 : index
    %c0_16 = arith.constant 0 : index
    %21 = vector.load %arg2[%c2, %c0_15, %c0_16] : memref<5x128x128xbf16, #tpu.memory_space<vmem>>, vector<1x128x128xbf16>
    %22 = vector.shape_cast %21 : vector<1x128x128xbf16> to vector<128x128xbf16>
    %c2_17 = arith.constant 2 : index
    %c0_18 = arith.constant 0 : index
    %c0_19 = arith.constant 0 : index
    %23 = vector.load %arg3[%c2_17, %c0_18, %c0_19] : memref<5x1x128xf32, #tpu.memory_space<vmem>>, vector<1x1x128xf32>
    %24 = vector.shape_cast %23 : vector<1x1x128xf32> to vector<1x128xf32>
    %25 = arith.truncf %20 : vector<64x128xf32> to vector<64x128xbf16>
    %cst_20 = arith.constant dense<0.000000e+00> : vector<64x128xf32>
    %26 = tpu.matmul %25, %22, %cst_20 {dimension_numbers = #tpu.dot_dimension_numbers<[1], [0], [0], [1], [0, 0, 1, 1], [], []>} : vector<64x128xbf16>, vector<128x128xbf16>, vector<64x128xf32> -> vector<64x128xf32>
    %27 = vector.broadcast %24 : vector<1x128xf32> to vector<64x128xf32>
    %28 = arith.addf %26, %27 : vector<64x128xf32>
    %cst_21 = arith.constant 0.000000e+00 : f32
    %29 = vector.broadcast %cst_21 : f32 to vector<64x128xf32>
    %30 = arith.maximumf %28, %29 : vector<64x128xf32>
    %c3 = arith.constant 3 : index
    %c0_22 = arith.constant 0 : index
    %c0_23 = arith.constant 0 : index
    %31 = vector.load %arg2[%c3, %c0_22, %c0_23] : memref<5x128x128xbf16, #tpu.memory_space<vmem>>, vector<1x128x128xbf16>
    %32 = vector.shape_cast %31 : vector<1x128x128xbf16> to vector<128x128xbf16>
    %c3_24 = arith.constant 3 : index
    %c0_25 = arith.constant 0 : index
    %c0_26 = arith.constant 0 : index
    %33 = vector.load %arg3[%c3_24, %c0_25, %c0_26] : memref<5x1x128xf32, #tpu.memory_space<vmem>>, vector<1x1x128xf32>
    %34 = vector.shape_cast %33 : vector<1x1x128xf32> to vector<1x128xf32>
    %35 = arith.truncf %30 : vector<64x128xf32> to vector<64x128xbf16>
    %cst_27 = arith.constant dense<0.000000e+00> : vector<64x128xf32>
    %36 = tpu.matmul %35, %32, %cst_27 {dimension_numbers = #tpu.dot_dimension_numbers<[1], [0], [0], [1], [0, 0, 1, 1], [], []>} : vector<64x128xbf16>, vector<128x128xbf16>, vector<64x128xf32> -> vector<64x128xf32>
    %37 = vector.broadcast %34 : vector<1x128xf32> to vector<64x128xf32>
    %38 = arith.addf %36, %37 : vector<64x128xf32>
    %cst_28 = arith.constant 0.000000e+00 : f32
    %39 = vector.broadcast %cst_28 : f32 to vector<64x128xf32>
    %40 = arith.maximumf %38, %39 : vector<64x128xf32>
    %c4 = arith.constant 4 : index
    %c0_29 = arith.constant 0 : index
    %c0_30 = arith.constant 0 : index
    %41 = vector.load %arg2[%c4, %c0_29, %c0_30] : memref<5x128x128xbf16, #tpu.memory_space<vmem>>, vector<1x128x128xbf16>
    %42 = vector.shape_cast %41 : vector<1x128x128xbf16> to vector<128x128xbf16>
    %c4_31 = arith.constant 4 : index
    %c0_32 = arith.constant 0 : index
    %c0_33 = arith.constant 0 : index
    %43 = vector.load %arg3[%c4_31, %c0_32, %c0_33] : memref<5x1x128xf32, #tpu.memory_space<vmem>>, vector<1x1x128xf32>
    %44 = vector.shape_cast %43 : vector<1x1x128xf32> to vector<1x128xf32>
    %45 = arith.truncf %40 : vector<64x128xf32> to vector<64x128xbf16>
    %cst_34 = arith.constant dense<0.000000e+00> : vector<64x128xf32>
    %46 = tpu.matmul %45, %42, %cst_34 {dimension_numbers = #tpu.dot_dimension_numbers<[1], [0], [0], [1], [0, 0, 1, 1], [], []>} : vector<64x128xbf16>, vector<128x128xbf16>, vector<64x128xf32> -> vector<64x128xf32>
    %47 = vector.broadcast %44 : vector<1x128xf32> to vector<64x128xf32>
    %48 = arith.addf %46, %47 : vector<64x128xf32>
    %cst_35 = arith.constant 0.000000e+00 : f32
    %49 = vector.broadcast %cst_35 : f32 to vector<64x128xf32>
    %50 = arith.maximumf %48, %49 : vector<64x128xf32>
    %c0_36 = arith.constant 0 : index
    %c0_37 = arith.constant 0 : index
    %51 = vector.load %arg1[%c0_36, %c0_37] : memref<64x128xf32, #tpu.memory_space<vmem>>, vector<64x128xf32>
    %cst_38 = arith.constant 1.000000e+00 : f32
    %52 = vector.broadcast %cst_38 : f32 to vector<64x128xf32>
    %53 = arith.subf %52, %51 : vector<64x128xf32>
    %54 = arith.mulf %53, %50 : vector<64x128xf32>
    %c0_39 = arith.constant 0 : index
    %c0_40 = arith.constant 0 : index
    %55 = vector.load %arg4[%c0_39, %c0_40] : memref<64x128xf32, #tpu.memory_space<vmem>>, vector<64x128xf32>
    tpu.vector_store %arg4[%c0_39, %c0_40], %54 {strides = array<i32>} : memref<64x128xf32, #tpu.memory_space<vmem>>, vector<64x128xf32>,
    return
  }
  func.func @transform_0(%arg0: i32) -> (i32, i32) {
    %c0_i32 = arith.constant 0 : i32
    %c0_i32_0 = arith.constant 0 : i32
    return %arg0, %c0_i32 : i32, i32
  }
  func.func @transform_1(%arg0: i32) -> (i32, i32, i32) {
    %c0_i32 = arith.constant 0 : i32
    %c0_i32_0 = arith.constant 0 : i32
    %c0_i32_1 = arith.constant 0 : i32
    %c0_i32_2 = arith.constant 0 : i32
    return %c0_i32, %c0_i32_0, %c0_i32_1 : i32, i32, i32
  }
  func.func @transform_2(%arg0: i32) -> (i32, i32, i32) {
    %c0_i32 = arith.constant 0 : i32
    %c0_i32_0 = arith.constant 0 : i32
    %c0_i32_1 = arith.constant 0 : i32
    %c0_i32_2 = arith.constant 0 : i32
    return %c0_i32, %c0_i32_0, %c0_i32_1 : i32, i32, i32
  }
  func.func @transform_3(%arg0: i32) -> (i32, i32) {
    %c0_i32 = arith.constant 0 : i32
    %c0_i32_0 = arith.constant 0 : i32
    return %arg0, %c0_i32 : i32, i32
  }
}

</mosaic_0001>

<llo_original>
// kernel: net_forward_batched.1
$region0: #{net_forward_batched.1}
  #allocation0 [shape = 'u32[]', space=smem, size = 0x4, offset = 0x4, fixed_abs, tag = 'smem constant byte address 0x4 - core index']
  #allocation1 [shape = 'u32[144,128]{1,0:T(1,128)}', space=vmem, size = 0x12000, scoped, tag = 'internal scratch']
  %s0 = inlined_call_operand.vmem [shape: f32[64,128], index: 0, kind: input, shape index: {}]
  %s1 = inlined_call_operand.vmem [shape: bf16[5,128,128], index: 1, kind: input, shape index: {}]
  %s2 = inlined_call_operand.vmem [shape: f32[5,1,128], index: 2, kind: input, shape index: {}]
  %s3 = inlined_call_operand.vmem [shape: f32[64,128], index: 3, kind: output, shape index: {}]
  %s4 = sld [smem:[#allocation0]]
  $region22: #{net_forward_batched.1} parent=0
    _
  %s6 = ssub.s32 1, %s4
  %s7 = scalar_select 0, %s6, %s4
  // Predicated region
  $region2: #{net_forward_batched.1} parent=0 // pred_check
    _
  $region3: #{net_forward_batched.1} parent=0 // pred_check_branch
    %9 = sbr.rel (0) target = $region5
  $region4: #{net_forward_batched.1} parent=0 // pred_region
    _
  $region5: #{net_forward_batched.1} parent=0 // pred_fallthru
    _
  // Predicated region
  $region6: #{net_forward_batched.1} parent=0 // pred_check
    _
  $region7: #{net_forward_batched.1} parent=0 // pred_check_branch
    %11 = sbr.rel (0) target = $region9
  $region8: #{net_forward_batched.1} parent=0 // pred_region
    _
  $region9: #{net_forward_batched.1} parent=0 // pred_fallthru
    _
  // Predicated region
  $region10: #{net_forward_batched.1} parent=0 // pred_check
    _
  $region11: #{net_forward_batched.1} parent=0 // pred_check_branch
    %13 = sbr.rel (0) target = $region13
  $region12: #{net_forward_batched.1} parent=0 // pred_region
    _
  $region13: #{net_forward_batched.1} parent=0 // pred_fallthru
    _
  %v15 = vld [vmem:[%s0] sm:$0xff]
  %v16 = vld [vmem:[%s0 + $0x8] sm:$0xff]
  %v17 = vld [vmem:[%s0 + $0x10] sm:$0xff]
  %v18 = vld [vmem:[%s0 + $0x18] sm:$0xff]
  %v19 = vld [vmem:[%s0 + $0x20] sm:$0xff]
  %v20 = vld [vmem:[%s0 + $0x28] sm:$0xff]
  %v21 = vld [vmem:[%s0 + $0x30] sm:$0xff]
  %v22 = vld [vmem:[%s0 + $0x38] sm:$0xff]
  %v23 = vld [vmem:[%s1] sm:$0xf]
  %v24 = vld [vmem:[%s1 + $0x4] sm:$0xf]
  %v25 = vld [vmem:[%s1 + $0x8] sm:$0xf]
  %v26 = vld [vmem:[%s1 + $0xc] sm:$0xf]
  %v27 = vld [vmem:[%s1 + $0x10] sm:$0xf]
  %v28 = vld [vmem:[%s1 + $0x14] sm:$0xf]
  %v29 = vld [vmem:[%s1 + $0x18] sm:$0xf]
  %v30 = vld [vmem:[%s1 + $0x1c] sm:$0xf]
  %v31 = vld [vmem:[%s1 + $0x20] sm:$0xf]
  %v32 = vld [vmem:[%s1 + $0x24] sm:$0xf]
  %v33 = vld [vmem:[%s1 + $0x28] sm:$0xf]
  %v34 = vld [vmem:[%s1 + $0x2c] sm:$0xf]
  %v35 = vld [vmem:[%s1 + $0x30] sm:$0xf]
  %v36 = vld [vmem:[%s1 + $0x34] sm:$0xf]
  %v37 = vld [vmem:[%s1 + $0x38] sm:$0xf]
  %v38 = vld [vmem:[%s1 + $0x3c] sm:$0xf]
  %v39 = vld [vmem:[%s2] sm:$0x1]
  %v40 = vpack.c.bf16 %v16, %v15
  %v41 = vpack.c.bf16 %v18, %v17
  %v42 = vpack.c.bf16 %v20, %v19
  %v43 = vpack.c.bf16 %v22, %v21
  %v45 = vlaneseq
  %v46 = vshrl.u32 %v45, 7
  %v47 = vsub.s32 0, %v46
  %v48 = vrot.slane %v39, %v47
  %v66 = vunpack.c.l.b16 %v23
  %v67 = vunpack.c.l.b16 %v24
  %v68 = vunpack.c.l.b16 %v25
  %v69 = vunpack.c.l.b16 %v26
  %v70 = vunpack.c.l.b16 %v27
  %v71 = vunpack.c.l.b16 %v28
  %v72 = vunpack.c.l.b16 %v29
  %v73 = vunpack.c.l.b16 %v30
  %v74 = vunpack.c.l.b16 %v31
  %v75 = vunpack.c.l.b16 %v32
  %v76 = vunpack.c.l.b16 %v33
  %v77 = vunpack.c.l.b16 %v34
  %v78 = vunpack.c.l.b16 %v35
  %v79 = vunpack.c.l.b16 %v36
  %v80 = vunpack.c.l.b16 %v37
  %v81 = vunpack.c.l.b16 %v38
  %v82 = vpack.c.b16 %v67, %v66
  %v83 = vpack.c.b16 %v69, %v68
  %v84 = vpack.c.b16 %v71, %v70
  %v85 = vpack.c.b16 %v73, %v72
  %v86 = vpack.c.b16 %v75, %v74
  %v87 = vpack.c.b16 %v77, %v76
  %v88 = vpack.c.b16 %v79, %v78
  %v89 = vpack.c.b16 %v81, %v80
  %98 = vmatprep.subr.bf16.mxu0 0
  %99 = vmatpush1.bf16.msra.mxu0 %v89
  %100 = vmatprep.subr.bf16.mxu0 0
  %101 = vmatpush1.bf16.msra.mxu0 %v88
  %102 = vmatprep.subr.bf16.mxu0 0
  %103 = vmatpush1.bf16.msra.mxu0 %v87
  %104 = vmatprep.subr.bf16.mxu0 0
  %105 = vmatpush1.bf16.msra.mxu0 %v86
  %106 = vmatprep.subr.bf16.mxu0 0
  %107 = vmatpush1.bf16.msra.mxu0 %v85
  %108 = vmatprep.subr.bf16.mxu0 0
  %109 = vmatpush1.bf16.msra.mxu0 %v84
  %110 = vmatprep.subr.bf16.mxu0 0
  %111 = vmatpush1.bf16.msra.mxu0 %v83
  %112 = vmatprep.subr.bf16.mxu0 0
  %113 = vmatpush1.bf16.msra.mxu0 %v82
  %114 = vmatprep.subr.bf16.mxu0 0
  %115 = vmatpush2.bf16.msra.mxu0 0
  %116 = vmatprep.subr.bf16.mxu0 0
  %117 = vmatpush2.bf16.msra.mxu0 0
  %118 = vmatprep.subr.bf16.mxu0 0
  %119 = vmatpush2.bf16.msra.mxu0 0
  %120 = vmatprep.subr.bf16.mxu0 0
  %121 = vmatpush2.bf16.msra.mxu0 0
  %122 = vmatprep.subr.bf16.mxu0 0
  %123 = vmatpush2.bf16.msra.mxu0 0
  %124 = vmatprep.subr.bf16.mxu0 0
  %125 = vmatpush2.bf16.msra.mxu0 0
  %126 = vmatprep.subr.bf16.mxu0 0
  %127 = vmatpush2.bf16.msra.mxu0 0
  %128 = vmatprep.subr.bf16.mxu0 0
  %129 = vmatpush2.bf16.msra.mxu0 0
  %130 = vmatprep.mubr.bf16.mxu0 0
  %131 = vmatmul.mubr.bf16.gmra.mxu0 %v40
  %v132 = vpop.f32.mrf.mxu0
  %v133 = vadd.f32 %v48, %v132
  %v134 = vpop.f32.mrf.mxu0
  %v135 = vpop.f32.mrf.mxu0
  %v136 = vadd.f32 %v48, %v135
  %v137 = vpop.f32.mrf.mxu0
  %138 = vmatprep.mubr.bf16.mxu0 0
  %139 = vmatmul.mubr.bf16.gmra.mxu0 %v41
  %v140 = vpop.f32.mrf.mxu0
  %v141 = vadd.f32 %v48, %v140
  %v142 = vpop.f32.mrf.mxu0
  %v143 = vpop.f32.mrf.mxu0
  %v144 = vadd.f32 %v48, %v143
  %v145 = vpop.f32.mrf.mxu0
  %146 = vmatprep.mubr.bf16.mxu0 0
  %147 = vmatmul.mubr.bf16.gmra.mxu0 %v42
  %v148 = vpop.f32.mrf.mxu0
  %v149 = vadd.f32 %v48, %v148
  %v150 = vpop.f32.mrf.mxu0
  %v151 = vpop.f32.mrf.mxu0
  %v152 = vadd.f32 %v48, %v151
  %v153 = vpop.f32.mrf.mxu0
  %154 = vmatprep.mubr.bf16.mxu0 0
  %155 = vmatmul.mubr.bf16.gmra.mxu0 %v43
  %v156 = vpop.f32.mrf.mxu0
  %v157 = vadd.f32 %v48, %v156
  %v158 = vpop.f32.mrf.mxu0
  %v159 = vpop.f32.mrf.mxu0
  %v160 = vadd.f32 %v48, %v159
  %v161 = vpop.f32.mrf.mxu0
  %162 = vdwg.mxu0
  %v163 = vmax.f32 %v133, 0.0
  %v164 = vmax.f32 %v136, 0.0
  %v165 = vmax.f32 %v141, 0.0
  %v166 = vmax.f32 %v144, 0.0
  %v167 = vmax.f32 %v149, 0.0
  %v168 = vmax.f32 %v152, 0.0
  %v169 = vmax.f32 %v157, 0.0
  %v170 = vmax.f32 %v160, 0.0
  %s171 = scalar_lea.vmem %s1, 64
  %v172 = vld [vmem:[%s171] sm:$0xf]
  %v173 = vld [vmem:[%s171 + $0x4] sm:$0xf]
  %v174 = vld [vmem:[%s171 + $0x8] sm:$0xf]
  %v175 = vld [vmem:[%s171 + $0xc] sm:$0xf]
  %v176 = vld [vmem:[%s171 + $0x10] sm:$0xf]
  %v177 = vld [vmem:[%s171 + $0x14] sm:$0xf]
  %v178 = vld [vmem:[%s171 + $0x18] sm:$0xf]
  %v179 = vld [vmem:[%s171 + $0x1c] sm:$0xf]
  %v180 = vld [vmem:[%s171 + $0x20] sm:$0xf]
  %v181 = vld [vmem:[%s171 + $0x24] sm:$0xf]
  %v182 = vld [vmem:[%s171 + $0x28] sm:$0xf]
  %v183 = vld [vmem:[%s171 + $0x2c] sm:$0xf]
  %v184 = vld [vmem:[%s171 + $0x30] sm:$0xf]
  %v185 = vld [vmem:[%s171 + $0x34] sm:$0xf]
  %v186 = vld [vmem:[%s171 + $0x38] sm:$0xf]
  %v187 = vld [vmem:[%s171 + $0x3c] sm:$0xf]
  %s188 = scalar_lea.vmem %s2, 1
  %v189 = vld [vmem:[%s188] sm:$0x1]
  %v190 = vpack.c.bf16 %v164, %v163
  %v191 = vpack.c.bf16 %v166, %v165
  %v192 = vpack.c.bf16 %v168, %v167
  %v193 = vpack.c.bf16 %v170, %v169
  %v195 = vlaneseq
  %v196 = vshrl.u32 %v195, 7
  %v197 = vsub.s32 0, %v196
  %v198 = vrot.slane %v189, %v197
  %v216 = vunpack.c.l.b16 %v172
  %v217 = vunpack.c.l.b16 %v173
  %v218 = vunpack.c.l.b16 %v174
  %v219 = vunpack.c.l.b16 %v175
  %v220 = vunpack.c.l.b16 %v176
  %v221 = vunpack.c.l.b16 %v177
  %v222 = vunpack.c.l.b16 %v178
  %v223 = vunpack.c.l.b16 %v179
  %v224 = vunpack.c.l.b16 %v180
  %v225 = vunpack.c.l.b16 %v181
  %v226 = vunpack.c.l.b16 %v182
  %v227 = vunpack.c.l.b16 %v183
  %v228 = vunpack.c.l.b16 %v184
  %v229 = vunpack.c.l.b16 %v185
  %v230 = vunpack.c.l.b16 %v186
  %v231 = vunpack.c.l.b16 %v187
  %v232 = vpack.c.b16 %v217, %v216
  %v233 = vpack.c.b16 %v219, %v218
  %v234 = vpack.c.b16 %v221, %v220
  %v235 = vpack.c.b16 %v223, %v222
  %v236 = vpack.c.b16 %v225, %v224
  %v237 = vpack.c.b16 %v227, %v226
  %v238 = vpack.c.b16 %v229, %v228
  %v239 = vpack.c.b16 %v231, %v230
  %248 = vmatprep.subr.bf16.mxu0 0
  %249 = vmatpush1.bf16.msra.mxu0 %v239
  %250 = vmatprep.subr.bf16.mxu0 0
  %251 = vmatpush1.bf16.msra.mxu0 %v238
  %252 = vmatprep.subr.bf16.mxu0 0
  %253 = vmatpush1.bf16.msra.mxu0 %v237
  %254 = vmatprep.subr.bf16.mxu0 0
  %255 = vmatpush1.bf16.msra.mxu0 %v236
  %256 = vmatprep.subr.bf16.mxu0 0
  %257 = vmatpush1.bf16.msra.mxu0 %v235
  %258 = vmatprep.subr.bf16.mxu0 0
  %259 = vmatpush1.bf16.msra.mxu0 %v234
  %260 = vmatprep.subr.bf16.mxu0 0
  %261 = vmatpush1.bf16.msra.mxu0 %v233
  %262 = vmatprep.subr.bf16.mxu0 0
  %263 = vmatpush1.bf16.msra.mxu0 %v232
  %264 = vmatprep.subr.bf16.mxu0 0
  %265 = vmatpush2.bf16.msra.mxu0 0
  %266 = vmatprep.subr.bf16.mxu0 0
  %267 = vmatpush2.bf16.msra.mxu0 0
  %268 = vmatprep.subr.bf16.mxu0 0
  %269 = vmatpush2.bf16.msra.mxu0 0
  %270 = vmatprep.subr.bf16.mxu0 0
  %271 = vmatpush2.bf16.msra.mxu0 0
  %272 = vmatprep.subr.bf16.mxu0 0
  %273 = vmatpush2.bf16.msra.mxu0 0
  %274 = vmatprep.subr.bf16.mxu0 0
  %275 = vmatpush2.bf16.msra.mxu0 0
  %276 = vmatprep.subr.bf16.mxu0 0
  %277 = vmatpush2.bf16.msra.mxu0 0
  %278 = vmatprep.subr.bf16.mxu0 0
  %279 = vmatpush2.bf16.msra.mxu0 0
  %280 = vmatprep.mubr.bf16.mxu0 0
  %281 = vmatmul.mubr.bf16.gmra.mxu0 %v190
  %v282 = vpop.f32.mrf.mxu0
  %v283 = vadd.f32 %v198, %v282
  %v284 = vpop.f32.mrf.mxu0
  %v285 = vpop.f32.mrf.mxu0
  %v286 = vadd.f32 %v198, %v285
  %v287 = vpop.f32.mrf.mxu0
  %288 = vmatprep.mubr.bf16.mxu0 0
  %289 = vmatmul.mubr.bf16.gmra.mxu0 %v191
  %v290 = vpop.f32.mrf.mxu0
  %v291 = vadd.f32 %v198, %v290
  %v292 = vpop.f32.mrf.mxu0
  %v293 = vpop.f32.mrf.mxu0
  %v294 = vadd.f32 %v198, %v293
  %v295 = vpop.f32.mrf.mxu0
  %296 = vmatprep.mubr.bf16.mxu0 0
  %297 = vmatmul.mubr.bf16.gmra.mxu0 %v192
  %v298 = vpop.f32.mrf.mxu0
  %v299 = vadd.f32 %v198, %v298
  %v300 = vpop.f32.mrf.mxu0
  %v301 = vpop.f32.mrf.mxu0
  %v302 = vadd.f32 %v198, %v301
  %v303 = vpop.f32.mrf.mxu0
  %304 = vmatprep.mubr.bf16.mxu0 0
  %305 = vmatmul.mubr.bf16.gmra.mxu0 %v193
  %v306 = vpop.f32.mrf.mxu0
  %v307 = vadd.f32 %v198, %v306
  %v308 = vpop.f32.mrf.mxu0
  %v309 = vpop.f32.mrf.mxu0
  %v310 = vadd.f32 %v198, %v309
  %v311 = vpop.f32.mrf.mxu0
  %312 = vdwg.mxu0
  %v313 = vmax.f32 %v283, 0.0
  %v314 = vmax.f32 %v286, 0.0
  %v315 = vmax.f32 %v291, 0.0
  %v316 = vmax.f32 %v294, 0.0
  %v317 = vmax.f32 %v299, 0.0
  %v318 = vmax.f32 %v302, 0.0
  %v319 = vmax.f32 %v307, 0.0
  %v320 = vmax.f32 %v310, 0.0
  %s321 = scalar_lea.vmem %s1, 128
  %v322 = vld [vmem:[%s321] sm:$0xf]
  %v323 = vld [vmem:[%s321 + $0x4] sm:$0xf]
  %v324 = vld [vmem:[%s321 + $0x8] sm:$0xf]
  %v325 = vld [vmem:[%s321 + $0xc] sm:$0xf]
  %v326 = vld [vmem:[%s321 + $0x10] sm:$0xf]
  %v327 = vld [vmem:[%s321 + $0x14] sm:$0xf]
  %v328 = vld [vmem:[%s321 + $0x18] sm:$0xf]
  %v329 = vld [vmem:[%s321 + $0x1c] sm:$0xf]
  %v330 = vld [vmem:[%s321 + $0x20] sm:$0xf]
  %v331 = vld [vmem:[%s321 + $0x24] sm:$0xf]
  %v332 = vld [vmem:[%s321 + $0x28] sm:$0xf]
  %v333 = vld [vmem:[%s321 + $0x2c] sm:$0xf]
  %v334 = vld [vmem:[%s321 + $0x30] sm:$0xf]
  %v335 = vld [vmem:[%s321 + $0x34] sm:$0xf]
  %v336 = vld [vmem:[%s321 + $0x38] sm:$0xf]
  %v337 = vld [vmem:[%s321 + $0x3c] sm:$0xf]
  %s338 = scalar_lea.vmem %s2, 2
  %v339 = vld [vmem:[%s338] sm:$0x1]
  %v340 = vpack.c.bf16 %v314, %v313
  %v341 = vpack.c.bf16 %v316, %v315
  %v342 = vpack.c.bf16 %v318, %v317
  %v343 = vpack.c.bf16 %v320, %v319
  %v345 = vlaneseq
  %v346 = vshrl.u32 %v345, 7
  %v347 = vsub.s32 0, %v346
  %v348 = vrot.slane %v339, %v347
  %v366 = vunpack.c.l.b16 %v322
  %v367 = vunpack.c.l.b16 %v323
  %v368 = vunpack.c.l.b16 %v324
  %v369 = vunpack.c.l.b16 %v325
  %v370 = vunpack.c.l.b16 %v326
  %v371 = vunpack.c.l.b16 %v327
  %v372 = vunpack.c.l.b16 %v328
  %v373 = vunpack.c.l.b16 %v329
  %v374 = vunpack.c.l.b16 %v330
  %v375 = vunpack.c.l.b16 %v331
  %v376 = vunpack.c.l.b16 %v332
  %v377 = vunpack.c.l.b16 %v333
  %v378 = vunpack.c.l.b16 %v334
  %v379 = vunpack.c.l.b16 %v335
  %v380 = vunpack.c.l.b16 %v336
  %v381 = vunpack.c.l.b16 %v337
  %v382 = vpack.c.b16 %v367, %v366
  %v383 = vpack.c.b16 %v369, %v368
  %v384 = vpack.c.b16 %v371, %v370
  %v385 = vpack.c.b16 %v373, %v372
  %v386 = vpack.c.b16 %v375, %v374
  %v387 = vpack.c.b16 %v377, %v376
  %v388 = vpack.c.b16 %v379, %v378
  %v389 = vpack.c.b16 %v381, %v380
  %398 = vmatprep.subr.bf16.mxu0 0
  %399 = vmatpush1.bf16.msra.mxu0 %v389
  %400 = vmatprep.subr.bf16.mxu0 0
  %401 = vmatpush1.bf16.msra.mxu0 %v388
  %402 = vmatprep.subr.bf16.mxu0 0
  %403 = vmatpush1.bf16.msra.mxu0 %v387
  %404 = vmatprep.subr.bf16.mxu0 0
  %405 = vmatpush1.bf16.msra.mxu0 %v386
  %406 = vmatprep.subr.bf16.mxu0 0
  %407 = vmatpush1.bf16.msra.mxu0 %v385
  %408 = vmatprep.subr.bf16.mxu0 0
  %409 = vmatpush1.bf16.msra.mxu0 %v384
  %410 = vmatprep.subr.bf16.mxu0 0
  %411 = vmatpush1.bf16.msra.mxu0 %v383
  %412 = vmatprep.subr.bf16.mxu0 0
  %413 = vmatpush1.bf16.msra.mxu0 %v382
  %414 = vmatprep.subr.bf16.mxu0 0
  %415 = vmatpush2.bf16.msra.mxu0 0
  %416 = vmatprep.subr.bf16.mxu0 0
  %417 = vmatpush2.bf16.msra.mxu0 0
  %418 = vmatprep.subr.bf16.mxu0 0
  %419 = vmatpush2.bf16.msra.mxu0 0
  %420 = vmatprep.subr.bf16.mxu0 0
  %421 = vmatpush2.bf16.msra.mxu0 0
  %422 = vmatprep.subr.bf16.mxu0 0
  %423 = vmatpush2.bf16.msra.mxu0 0
  %424 = vmatprep.subr.bf16.mxu0 0
  %425 = vmatpush2.bf16.msra.mxu0 0
  %426 = vmatprep.subr.bf16.mxu0 0
  %427 = vmatpush2.bf16.msra.mxu0 0
  %428 = vmatprep.subr.bf16.mxu0 0
  %429 = vmatpush2.bf16.msra.mxu0 0
  %430 = vmatprep.mubr.bf16.mxu0 0
  %431 = vmatmul.mubr.bf16.gmra.mxu0 %v340
  %v432 = vpop.f32.mrf.mxu0
  %v433 = vadd.f32 %v348, %v432
  %v434 = vpop.f32.mrf.mxu0
  %v435 = vpop.f32.mrf.mxu0
  %v436 = vadd.f32 %v348, %v435
  %v437 = vpop.f32.mrf.mxu0
  %438 = vmatprep.mubr.bf16.mxu0 0
  %439 = vmatmul.mubr.bf16.gmra.mxu0 %v341
  %v440 = vpop.f32.mrf.mxu0
  %v441 = vadd.f32 %v348, %v440
  %v442 = vpop.f32.mrf.mxu0
  %v443 = vpop.f32.mrf.mxu0
  %v444 = vadd.f32 %v348, %v443
  %v445 = vpop.f32.mrf.mxu0
  %446 = vmatprep.mubr.bf16.mxu0 0
  %447 = vmatmul.mubr.bf16.gmra.mxu0 %v342
  %v448 = vpop.f32.mrf.mxu0
  %v449 = vadd.f32 %v348, %v448
  %v450 = vpop.f32.mrf.mxu0
  %v451 = vpop.f32.mrf.mxu0
  %v452 = vadd.f32 %v348, %v451
  %v453 = vpop.f32.mrf.mxu0
  %454 = vmatprep.mubr.bf16.mxu0 0
  %455 = vmatmul.mubr.bf16.gmra.mxu0 %v343
  %v456 = vpop.f32.mrf.mxu0
  %v457 = vadd.f32 %v348, %v456
  %v458 = vpop.f32.mrf.mxu0
  %v459 = vpop.f32.mrf.mxu0
  %v460 = vadd.f32 %v348, %v459
  %v461 = vpop.f32.mrf.mxu0
  %462 = vdwg.mxu0
  %v463 = vmax.f32 %v433, 0.0
  %v464 = vmax.f32 %v436, 0.0
  %v465 = vmax.f32 %v441, 0.0
  %v466 = vmax.f32 %v444, 0.0
  %v467 = vmax.f32 %v449, 0.0
  %v468 = vmax.f32 %v452, 0.0
  %v469 = vmax.f32 %v457, 0.0
  %v470 = vmax.f32 %v460, 0.0
  %s471 = scalar_lea.vmem %s1, 192
  %v472 = vld [vmem:[%s471] sm:$0xf]
  %v473 = vld [vmem:[%s471 + $0x4] sm:$0xf]
  %v474 = vld [vmem:[%s471 + $0x8] sm:$0xf]
  %v475 = vld [vmem:[%s471 + $0xc] sm:$0xf]
  %v476 = vld [vmem:[%s471 + $0x10] sm:$0xf]
  %v477 = vld [vmem:[%s471 + $0x14] sm:$0xf]
  %v478 = vld [vmem:[%s471 + $0x18] sm:$0xf]
  %v479 = vld [vmem:[%s471 + $0x1c] sm:$0xf]
  %v480 = vld [vmem:[%s471 + $0x20] sm:$0xf]
  %v481 = vld [vmem:[%s471 + $0x24] sm:$0xf]
  %v482 = vld [vmem:[%s471 + $0x28] sm:$0xf]
  %v483 = vld [vmem:[%s471 + $0x2c] sm:$0xf]
  %v484 = vld [vmem:[%s471 + $0x30] sm:$0xf]
  %v485 = vld [vmem:[%s471 + $0x34] sm:$0xf]
  %v486 = vld [vmem:[%s471 + $0x38] sm:$0xf]
  %v487 = vld [vmem:[%s471 + $0x3c] sm:$0xf]
  %s488 = scalar_lea.vmem %s2, 3
  %v489 = vld [vmem:[%s488] sm:$0x1]
  %v490 = vpack.c.bf16 %v464, %v463
  %v491 = vpack.c.bf16 %v466, %v465
  %v492 = vpack.c.bf16 %v468, %v467
  %v493 = vpack.c.bf16 %v470, %v469
  %v495 = vlaneseq
  %v496 = vshrl.u32 %v495, 7
  %v497 = vsub.s32 0, %v496
  %v498 = vrot.slane %v489, %v497
  %v516 = vunpack.c.l.b16 %v472
  %v517 = vunpack.c.l.b16 %v473
  %v518 = vunpack.c.l.b16 %v474
  %v519 = vunpack.c.l.b16 %v475
  %v520 = vunpack.c.l.b16 %v476
  %v521 = vunpack.c.l.b16 %v477
  %v522 = vunpack.c.l.b16 %v478
  %v523 = vunpack.c.l.b16 %v479
  %v524 = vunpack.c.l.b16 %v480
  %v525 = vunpack.c.l.b16 %v481
  %v526 = vunpack.c.l.b16 %v482
  %v527 = vunpack.c.l.b16 %v483
  %v528 = vunpack.c.l.b16 %v484
  %v529 = vunpack.c.l.b16 %v485
  %v530 = vunpack.c.l.b16 %v486
  %v531 = vunpack.c.l.b16 %v487
  %v532 = vpack.c.b16 %v517, %v516
  %v533 = vpack.c.b16 %v519, %v518
  %v534 = vpack.c.b16 %v521, %v520
  %v535 = vpack.c.b16 %v523, %v522
  %v536 = vpack.c.b16 %v525, %v524
  %v537 = vpack.c.b16 %v527, %v526
  %v538 = vpack.c.b16 %v529, %v528
  %v539 = vpack.c.b16 %v531, %v530
  %548 = vmatprep.subr.bf16.mxu0 0
  %549 = vmatpush1.bf16.msra.mxu0 %v539
  %550 = vmatprep.subr.bf16.mxu0 0
  %551 = vmatpush1.bf16.msra.mxu0 %v538
  %552 = vmatprep.subr.bf16.mxu0 0
  %553 = vmatpush1.bf16.msra.mxu0 %v537
  %554 = vmatprep.subr.bf16.mxu0 0
  %555 = vmatpush1.bf16.msra.mxu0 %v536
  %556 = vmatprep.subr.bf16.mxu0 0
  %557 = vmatpush1.bf16.msra.mxu0 %v535
  %558 = vmatprep.subr.bf16.mxu0 0
  %559 = vmatpush1.bf16.msra.mxu0 %v534
  %560 = vmatprep.subr.bf16.mxu0 0
  %561 = vmatpush1.bf16.msra.mxu0 %v533
  %562 = vmatprep.subr.bf16.mxu0 0
  %563 = vmatpush1.bf16.msra.mxu0 %v532
  %564 = vmatprep.subr.bf16.mxu0 0
  %565 = vmatpush2.bf16.msra.mxu0 0
  %566 = vmatprep.subr.bf16.mxu0 0
  %567 = vmatpush2.bf16.msra.mxu0 0
  %568 = vmatprep.subr.bf16.mxu0 0
  %569 = vmatpush2.bf16.msra.mxu0 0
  %570 = vmatprep.subr.bf16.mxu0 0
  %571 = vmatpush2.bf16.msra.mxu0 0
  %572 = vmatprep.subr.bf16.mxu0 0
  %573 = vmatpush2.bf16.msra.mxu0 0
  %574 = vmatprep.subr.bf16.mxu0 0
  %575 = vmatpush2.bf16.msra.mxu0 0
  %576 = vmatprep.subr.bf16.mxu0 0
  %577 = vmatpush2.bf16.msra.mxu0 0
  %578 = vmatprep.subr.bf16.mxu0 0
  %579 = vmatpush2.bf16.msra.mxu0 0
  %580 = vmatprep.mubr.bf16.mxu0 0
  %581 = vmatmul.mubr.bf16.gmra.mxu0 %v490
  %v582 = vpop.f32.mrf.mxu0
  %v583 = vadd.f32 %v498, %v582
  %v584 = vpop.f32.mrf.mxu0
  %v585 = vpop.f32.mrf.mxu0
  %v586 = vadd.f32 %v498, %v585
  %v587 = vpop.f32.mrf.mxu0
  %588 = vmatprep.mubr.bf16.mxu0 0
  %589 = vmatmul.mubr.bf16.gmra.mxu0 %v491
  %v590 = vpop.f32.mrf.mxu0
  %v591 = vadd.f32 %v498, %v590
  %v592 = vpop.f32.mrf.mxu0
  %v593 = vpop.f32.mrf.mxu0
  %v594 = vadd.f32 %v498, %v593
  %v595 = vpop.f32.mrf.mxu0
  %596 = vmatprep.mubr.bf16.mxu0 0
  %597 = vmatmul.mubr.bf16.gmra.mxu0 %v492
  %v598 = vpop.f32.mrf.mxu0
  %v599 = vadd.f32 %v498, %v598
  %v600 = vpop.f32.mrf.mxu0
  %v601 = vpop.f32.mrf.mxu0
  %v602 = vadd.f32 %v498, %v601
  %v603 = vpop.f32.mrf.mxu0
  %604 = vmatprep.mubr.bf16.mxu0 0
  %605 = vmatmul.mubr.bf16.gmra.mxu0 %v493
  %v606 = vpop.f32.mrf.mxu0
  %v607 = vadd.f32 %v498, %v606
  %v608 = vpop.f32.mrf.mxu0
  %v609 = vpop.f32.mrf.mxu0
  %v610 = vadd.f32 %v498, %v609
  %v611 = vpop.f32.mrf.mxu0
  %612 = vdwg.mxu0
  %v613 = vmax.f32 %v583, 0.0
  %v614 = vmax.f32 %v586, 0.0
  %v615 = vmax.f32 %v591, 0.0
  %v616 = vmax.f32 %v594, 0.0
  %v617 = vmax.f32 %v599, 0.0
  %v618 = vmax.f32 %v602, 0.0
  %v619 = vmax.f32 %v607, 0.0
  %v620 = vmax.f32 %v610, 0.0
  %s621 = scalar_lea.vmem %s1, 256
  %v622 = vld [vmem:[%s621] sm:$0xf]
  %v623 = vld [vmem:[%s621 + $0x4] sm:$0xf]
  %v624 = vld [vmem:[%s621 + $0x8] sm:$0xf]
  %v625 = vld [vmem:[%s621 + $0xc] sm:$0xf]
  %v626 = vld [vmem:[%s621 + $0x10] sm:$0xf]
  %v627 = vld [vmem:[%s621 + $0x14] sm:$0xf]
  %v628 = vld [vmem:[%s621 + $0x18] sm:$0xf]
  %v629 = vld [vmem:[%s621 + $0x1c] sm:$0xf]
  %v630 = vld [vmem:[%s621 + $0x20] sm:$0xf]
  %v631 = vld [vmem:[%s621 + $0x24] sm:$0xf]
  %v632 = vld [vmem:[%s621 + $0x28] sm:$0xf]
  %v633 = vld [vmem:[%s621 + $0x2c] sm:$0xf]
  %v634 = vld [vmem:[%s621 + $0x30] sm:$0xf]
  %v635 = vld [vmem:[%s621 + $0x34] sm:$0xf]
  %v636 = vld [vmem:[%s621 + $0x38] sm:$0xf]
  %v637 = vld [vmem:[%s621 + $0x3c] sm:$0xf]
  %s638 = scalar_lea.vmem %s2, 4
  %v639 = vld [vmem:[%s638] sm:$0x1]
  %v640 = vpack.c.bf16 %v614, %v613
  %v641 = vpack.c.bf16 %v616, %v615
  %v642 = vpack.c.bf16 %v618, %v617
  %v643 = vpack.c.bf16 %v620, %v619
  %v645 = vlaneseq
  %v646 = vshrl.u32 %v645, 7
  %v647 = vsub.s32 0, %v646
  %v648 = vrot.slane %v639, %v647
  %v666 = vunpack.c.l.b16 %v622
  %v667 = vunpack.c.l.b16 %v623
  %v668 = vunpack.c.l.b16 %v624
  %v669 = vunpack.c.l.b16 %v625
  %v670 = vunpack.c.l.b16 %v626
  %v671 = vunpack.c.l.b16 %v627
  %v672 = vunpack.c.l.b16 %v628
  %v673 = vunpack.c.l.b16 %v629
  %v674 = vunpack.c.l.b16 %v630
  %v675 = vunpack.c.l.b16 %v631
  %v676 = vunpack.c.l.b16 %v632
  %v677 = vunpack.c.l.b16 %v633
  %v678 = vunpack.c.l.b16 %v634
  %v679 = vunpack.c.l.b16 %v635
  %v680 = vunpack.c.l.b16 %v636
  %v681 = vunpack.c.l.b16 %v637
  %v682 = vpack.c.b16 %v667, %v666
  %v683 = vpack.c.b16 %v669, %v668
  %v684 = vpack.c.b16 %v671, %v670
  %v685 = vpack.c.b16 %v673, %v672
  %v686 = vpack.c.b16 %v675, %v674
  %v687 = vpack.c.b16 %v677, %v676
  %v688 = vpack.c.b16 %v679, %v678
  %v689 = vpack.c.b16 %v681, %v680
  %698 = vmatprep.subr.bf16.mxu0 0
  %699 = vmatpush1.bf16.msra.mxu0 %v689
  %700 = vmatprep.subr.bf16.mxu0 0
  %701 = vmatpush1.bf16.msra.mxu0 %v688
  %702 = vmatprep.subr.bf16.mxu0 0
  %703 = vmatpush1.bf16.msra.mxu0 %v687
  %704 = vmatprep.subr.bf16.mxu0 0
  %705 = vmatpush1.bf16.msra.mxu0 %v686
  %706 = vmatprep.subr.bf16.mxu0 0
  %707 = vmatpush1.bf16.msra.mxu0 %v685
  %708 = vmatprep.subr.bf16.mxu0 0
  %709 = vmatpush1.bf16.msra.mxu0 %v684
  %710 = vmatprep.subr.bf16.mxu0 0
  %711 = vmatpush1.bf16.msra.mxu0 %v683
  %712 = vmatprep.subr.bf16.mxu0 0
  %713 = vmatpush1.bf16.msra.mxu0 %v682
  %714 = vmatprep.subr.bf16.mxu0 0
  %715 = vmatpush2.bf16.msra.mxu0 0
  %716 = vmatprep.subr.bf16.mxu0 0
  %717 = vmatpush2.bf16.msra.mxu0 0
  %718 = vmatprep.subr.bf16.mxu0 0
  %719 = vmatpush2.bf16.msra.mxu0 0
  %720 = vmatprep.subr.bf16.mxu0 0
  %721 = vmatpush2.bf16.msra.mxu0 0
  %722 = vmatprep.subr.bf16.mxu0 0
  %723 = vmatpush2.bf16.msra.mxu0 0
  %724 = vmatprep.subr.bf16.mxu0 0
  %725 = vmatpush2.bf16.msra.mxu0 0
  %726 = vmatprep.subr.bf16.mxu0 0
  %727 = vmatpush2.bf16.msra.mxu0 0
  %728 = vmatprep.subr.bf16.mxu0 0
  %729 = vmatpush2.bf16.msra.mxu0 0
  %730 = vmatprep.mubr.bf16.mxu0 0
  %731 = vmatmul.mubr.bf16.gmra.mxu0 %v640
  %v732 = vpop.f32.mrf.mxu0
  %v733 = vadd.f32 %v648, %v732
  %v734 = vpop.f32.mrf.mxu0
  %v735 = vpop.f32.mrf.mxu0
  %v736 = vadd.f32 %v648, %v735
  %v737 = vpop.f32.mrf.mxu0
  %738 = vmatprep.mubr.bf16.mxu0 0
  %739 = vmatmul.mubr.bf16.gmra.mxu0 %v641
  %v740 = vpop.f32.mrf.mxu0
  %v741 = vadd.f32 %v648, %v740
  %v742 = vpop.f32.mrf.mxu0
  %v743 = vpop.f32.mrf.mxu0
  %v744 = vadd.f32 %v648, %v743
  %v745 = vpop.f32.mrf.mxu0
  %746 = vmatprep.mubr.bf16.mxu0 0
  %747 = vmatmul.mubr.bf16.gmra.mxu0 %v642
  %v748 = vpop.f32.mrf.mxu0
  %v749 = vadd.f32 %v648, %v748
  %v750 = vpop.f32.mrf.mxu0
  %v751 = vpop.f32.mrf.mxu0
  %v752 = vadd.f32 %v648, %v751
  %v753 = vpop.f32.mrf.mxu0
  %754 = vmatprep.mubr.bf16.mxu0 0
  %755 = vmatmul.mubr.bf16.gmra.mxu0 %v643
  %v756 = vpop.f32.mrf.mxu0
  %v757 = vadd.f32 %v648, %v756
  %v758 = vpop.f32.mrf.mxu0
  %v759 = vpop.f32.mrf.mxu0
  %v760 = vadd.f32 %v648, %v759
  %v761 = vpop.f32.mrf.mxu0
  %762 = vdwg.mxu0
  %v763 = vmax.f32 %v733, 0.0
  %v764 = vmax.f32 %v736, 0.0
  %v765 = vmax.f32 %v741, 0.0
  %v766 = vmax.f32 %v744, 0.0
  %v767 = vmax.f32 %v749, 0.0
  %v768 = vmax.f32 %v752, 0.0
  %v769 = vmax.f32 %v757, 0.0
  %v770 = vmax.f32 %v760, 0.0
  %v771 = vsub.f32 1.0, %v15
  %v772 = vsub.f32 1.0, %v16
  %v773 = vsub.f32 1.0, %v17
  %v774 = vsub.f32 1.0, %v18
  %v775 = vsub.f32 1.0, %v19
  %v776 = vsub.f32 1.0, %v20
  %v777 = vsub.f32 1.0, %v21
  %v778 = vsub.f32 1.0, %v22
  %v779 = vmul.f32 %v771, %v763
  %v780 = vmul.f32 %v772, %v764
  %v781 = vmul.f32 %v773, %v765
  %v782 = vmul.f32 %v774, %v766
  %v783 = vmul.f32 %v775, %v767
  %v784 = vmul.f32 %v776, %v768
  %v785 = vmul.f32 %v777, %v769
  %v786 = vmul.f32 %v778, %v770
  %787 = vst [vmem:[%s3] sm:$0xff] %v779
  %788 = vst [vmem:[%s3 + $0x8] sm:$0xff] %v780
  %789 = vst [vmem:[%s3 + $0x10] sm:$0xff] %v781
  %790 = vst [vmem:[%s3 + $0x18] sm:$0xff] %v782
  %791 = vst [vmem:[%s3 + $0x20] sm:$0xff] %v783
  %792 = vst [vmem:[%s3 + $0x28] sm:$0xff] %v784
  %793 = vst [vmem:[%s3 + $0x30] sm:$0xff] %v785
  %794 = vst [vmem:[%s3 + $0x38] sm:$0xff] %v786
  // Predicated region
  $region14: #{net_forward_batched.1} parent=0 // pred_check
    _
  $region15: #{net_forward_batched.1} parent=0 // pred_check_branch
    %796 = sbr.rel (0) target = $region17
  $region16: #{net_forward_batched.1} parent=0 // pred_region
    _
  $region17: #{net_forward_batched.1} parent=0 // pred_fallthru
    _
  // Predicated region
  $region18: #{net_forward_batched.1} parent=0 // pred_check
    _
  $region19: #{net_forward_batched.1} parent=0 // pred_check_branch
    %798 = sbr.rel (0) target = $region21
  $region20: #{net_forward_batched.1} parent=0 // pred_region
    _
  $region21: #{net_forward_batched.1} parent=0 // pred_fallthru
    _

</llo_original>
